<compile_context>
chip_gen: v7x
topology: tpu7x:2x2x1
jax: 0.10.0
libtpu: 0.0.40
codegen_flags: <defaults>
</compile_context>

<pallas_src>
import functools

import jax
import jax.numpy as jnp
from jax import lax
from jax.experimental import pallas as pl
from jax.experimental.pallas import tpu as pltpu


def _fc_kernel(x_ref, w_ref, b_ref, o_ref, acc_ref, *, use_activation: bool):
    """One (tm, tn) output tile; accumulates over the K grid axis.

    x_ref: (tm, tk)   activation tile
    w_ref: (tn, tk)   weight tile in nn.Linear layout (output_dim, input_dim)
    b_ref: (1, tn)    bias tile
    o_ref: (tm, tn)   output tile (written only on the last K step)
    acc_ref: (tm, tn) f32 VMEM accumulator scratch
    """
    k = pl.program_id(2)

    @pl.when(k == 0)
    def _():
        acc_ref[...] = jnp.zeros_like(acc_ref)

    x = x_ref[...]
    if use_activation:
        # Dropout (rate=0.0 / eval) is the identity; tanh goes to the EUP slot
        # and overlaps with the MXU push. (For huge N grids this could be
        # hoisted to an activation pre-pass, but EUP has slack here.)
        x = jnp.tanh(x)

    # Contract last dim of x (tm, tk) with last dim of w (tn, tk) -> (tm, tn).
    # Avoids any weight transpose in the wrapper.
    acc_ref[...] += lax.dot_general(
        x, w_ref[...],
        dimension_numbers=(((1,), (1,)), ((), ())),
        preferred_element_type=jnp.float32)

    @pl.when(k == pl.num_programs(2) - 1)
    def _():
        out = acc_ref[...] + b_ref[...].astype(jnp.float32)
        o_ref[...] = out.astype(o_ref.dtype)


def _pick_tile(dim: int, target: int) -> tuple[int, int]:
    """Return (tile, padded_dim). Full-extent block if dim <= target."""
    if dim <= target:
        return dim, dim
    padded = ((dim + target - 1) // target) * target
    return target, padded


def fc_layer(x, weight, bias, *, use_activation=True, dropout_rate=0.0,
             tm=256, tn=256, tk=512):
    """Pallas equivalent of FCLayer.forward (eval mode / dropout_rate == 0).

    x:      (batch, input_dim)
    weight: (output_dim, input_dim)   -- PyTorch nn.Linear convention
    bias:   (output_dim,)
    """
    # TODO(synk): training-mode dropout (rate > 0) not implemented; module
    # default is 0.0 and eval-mode dropout is the identity.
    assert dropout_rate == 0.0, "training-mode dropout not supported"

    M, K = x.shape
    N, K_w = weight.shape
    assert K == K_w, f"input_dim mismatch: {K} vs {K_w}"
    assert bias.shape == (N,)

    # Tile selection: 128/256-aligned targets; small dims use full-extent
    # blocks (legal regardless of alignment), large dims are zero-padded.
    tm_, Mp = _pick_tile(M, tm)
    tn_, Np = _pick_tile(N, tn)
    tk_, Kp = _pick_tile(K, tk)

    xp = x if (Mp == M and Kp == K) else jnp.pad(x, ((0, Mp - M), (0, Kp - K)))
    wp = weight if (Np == N and Kp == K) else jnp.pad(
        weight, ((0, Np - N), (0, Kp - K)))
    b2 = bias.reshape(1, N)
    bp = b2 if Np == N else jnp.pad(b2, ((0, 0), (0, Np - N)))

    grid = (Mp // tm_, Np // tn_, Kp // tk_)
    kernel = functools.partial(_fc_kernel, use_activation=use_activation)

    out = pl.pallas_call(
        kernel,
        out_shape=jax.ShapeDtypeStruct((Mp, Np), x.dtype),
        grid_spec=pltpu.PrefetchScalarGridSpec(
            num_scalar_prefetch=0,
            grid=grid,
            in_specs=[
                # x tile: (tm, tk) at (i, k)
                pl.BlockSpec((tm_, tk_), lambda i, j, k: (i, k)),
                # weight tile in (N, K) layout: (tn, tk) at (j, k)
                pl.BlockSpec((tn_, tk_), lambda i, j, k: (j, k)),
                # bias tile: (1, tn) at (0, j)
                pl.BlockSpec((1, tn_), lambda i, j, k: (0, j)),
            ],
            out_specs=pl.BlockSpec((tm_, tn_), lambda i, j, k: (i, j)),
            scratch_shapes=[pltpu.VMEM((tm_, tn_), jnp.float32)],
        ),
        compiler_params=pltpu.CompilerParams(
            dimension_semantics=("parallel", "parallel", "arbitrary")),
    )(xp, wp, bp)

    if (Mp, Np) != (M, N):
        out = out[:M, :N]
    return out


if __name__ == "__main__":
    key = jax.random.PRNGKey(0)
    k_x, k_w, k_b = jax.random.split(key, 3)

    batch, input_dim, output_dim = 8, 32, 64

    x = jax.random.normal(k_x, (batch, input_dim), dtype=jnp.float32)
    # Deterministic init mirroring nn.Linear's uniform(-1/sqrt(in), 1/sqrt(in)).
    bound = 1.0 / (input_dim ** 0.5)
    weight = jax.random.uniform(
        k_w, (output_dim, input_dim), minval=-bound, maxval=bound,
        dtype=jnp.float32)
    bias = jax.random.uniform(
        k_b, (output_dim,), minval=-bound, maxval=bound, dtype=jnp.float32)

    out = fc_layer(x, weight, bias, use_activation=True)
    out = jax.block_until_ready(out)

    # Reference check in plain JAX.
    ref = jnp.tanh(x) @ weight.T + bias
    assert out.shape == (batch, output_dim)
    assert jnp.allclose(out, ref, atol=1e-5, rtol=1e-5)

    # Also exercise the tiled / multi-grid-step path with padding.
    M2, K2, N2 = 300, 700, 520
    x2 = jax.random.normal(k_x, (M2, K2), dtype=jnp.float32)
    w2 = jax.random.uniform(k_w, (N2, K2), minval=-0.05, maxval=0.05,
                            dtype=jnp.float32)
    b2 = jax.random.uniform(k_b, (N2,), minval=-0.05, maxval=0.05,
                            dtype=jnp.float32)
    out2 = jax.block_until_ready(
        fc_layer(x2, w2, b2, use_activation=True, tm=128, tn=256, tk=256))
    ref2 = jnp.tanh(x2) @ w2.T + b2
    assert out2.shape == (M2, N2)
    assert jnp.allclose(out2, ref2, atol=1e-4, rtol=1e-4)

    print("KERNEL_OK")
</pallas_src>

<mosaic_0001>
module attributes {stable_mosaic.version = 11 : i64} {
  func.func @_fc_kernel(%arg0: i32, %arg1: i32, %arg2: i32, %arg3: memref<8x32xf32, #tpu.memory_space<vmem>>, %arg4: memref<64x32xf32, #tpu.memory_space<vmem>>, %arg5: memref<1x64xf32, #tpu.memory_space<vmem>>, %arg6: memref<8x64xf32, #tpu.memory_space<vmem>>, %arg7: memref<8x64xf32, #tpu.memory_space<vmem>>) attributes {dimension_semantics = [#tpu.dimension_semantics<parallel>, #tpu.dimension_semantics<parallel>, #tpu.dimension_semantics<arbitrary>], iteration_bounds = array<i64: 1, 1, 1>, scalar_prefetch = 0 : i64, scratch_operands = 1 : i64, tpu.core_type = #tpu.core_type<tc>, window_params = [{transform_indices = @transform_0, window_bounds = array<i64: 8, 32>}, {transform_indices = @transform_1, window_bounds = array<i64: 64, 32>}, {transform_indices = @transform_2, window_bounds = array<i64: 1, 64>}, {transform_indices = @transform_3, window_bounds = array<i64: 8, 64>}]} {
    %c0_i32 = arith.constant 0 : i32
    %0 = arith.cmpi eq, %arg2, %c0_i32 : i32
    %1 = arith.extui %0 : i1 to i32
    %c0_i32_0 = arith.constant 0 : i32
    %2 = arith.cmpi ne, %1, %c0_i32_0 : i32
    scf.if %2 {
      %cst_10 = arith.constant 0.000000e+00 : f32
      %13 = vector.broadcast %cst_10 : f32 to vector<8x64xf32>
      %c0_11 = arith.constant 0 : index
      %c0_12 = arith.constant 0 : index
      %14 = vector.load %arg7[%c0_11, %c0_12] : memref<8x64xf32, #tpu.memory_space<vmem>>, vector<8x64xf32>
      tpu.vector_store %arg7[%c0_11, %c0_12], %13 {strides = array<i32>} : memref<8x64xf32, #tpu.memory_space<vmem>>, vector<8x64xf32>,
    } else {
    }
    %c0 = arith.constant 0 : index
    %c0_1 = arith.constant 0 : index
    %3 = vector.load %arg3[%c0, %c0_1] : memref<8x32xf32, #tpu.memory_space<vmem>>, vector<8x32xf32>
    %4 = math.tanh %3 : vector<8x32xf32>
    %c0_2 = arith.constant 0 : index
    %c0_3 = arith.constant 0 : index
    %5 = vector.load %arg7[%c0_2, %c0_3] : memref<8x64xf32, #tpu.memory_space<vmem>>, vector<8x64xf32>
    %c0_4 = arith.constant 0 : index
    %c0_5 = arith.constant 0 : index
    %6 = vector.load %arg4[%c0_4, %c0_5] : memref<64x32xf32, #tpu.memory_space<vmem>>, vector<64x32xf32>
    %cst = arith.constant dense<0.000000e+00> : vector<8x64xf32>
    %7 = tpu.matmul %4, %6, %cst {dimension_numbers = #tpu.dot_dimension_numbers<[1], [1], [0], [0], [0, 0, 1, 0], [], []>} : vector<8x32xf32>, vector<64x32xf32>, vector<8x64xf32> -> vector<8x64xf32>
    %8 = arith.addf %5, %7 : vector<8x64xf32>
    %c0_6 = arith.constant 0 : index
    %c0_7 = arith.constant 0 : index
    %9 = vector.load %arg7[%c0_6, %c0_7] : memref<8x64xf32, #tpu.memory_space<vmem>>, vector<8x64xf32>
    tpu.vector_store %arg7[%c0_6, %c0_7], %8 {strides = array<i32>} : memref<8x64xf32, #tpu.memory_space<vmem>>, vector<8x64xf32>,
    %c0_i32_8 = arith.constant 0 : i32
    %10 = arith.cmpi eq, %arg2, %c0_i32_8 : i32
    %11 = arith.extui %10 : i1 to i32
    %c0_i32_9 = arith.constant 0 : i32
    %12 = arith.cmpi ne, %11, %c0_i32_9 : i32
    scf.if %12 {
      %c0_10 = arith.constant 0 : index
      %c0_11 = arith.constant 0 : index
      %13 = vector.load %arg7[%c0_10, %c0_11] : memref<8x64xf32, #tpu.memory_space<vmem>>, vector<8x64xf32>
      %c0_12 = arith.constant 0 : index
      %c0_13 = arith.constant 0 : index
      %14 = vector.load %arg5[%c0_12, %c0_13] : memref<1x64xf32, #tpu.memory_space<vmem>>, vector<1x64xf32>
      %15 = vector.broadcast %14 : vector<1x64xf32> to vector<8x64xf32>
      %16 = arith.addf %13, %15 : vector<8x64xf32>
      %c0_14 = arith.constant 0 : index
      %c0_15 = arith.constant 0 : index
      %17 = vector.load %arg6[%c0_14, %c0_15] : memref<8x64xf32, #tpu.memory_space<vmem>>, vector<8x64xf32>
      tpu.vector_store %arg6[%c0_14, %c0_15], %16 {strides = array<i32>} : memref<8x64xf32, #tpu.memory_space<vmem>>, vector<8x64xf32>,
    } else {
    }
    return
  }
  func.func @transform_0(%arg0: i32, %arg1: i32, %arg2: i32) -> (i32, i32) {
    %c0_i32 = arith.constant 0 : i32
    return %arg0, %arg2 : i32, i32
  }
  func.func @transform_1(%arg0: i32, %arg1: i32, %arg2: i32) -> (i32, i32) {
    %c0_i32 = arith.constant 0 : i32
    return %arg1, %arg2 : i32, i32
  }
  func.func @transform_2(%arg0: i32, %arg1: i32, %arg2: i32) -> (i32, i32) {
    %c0_i32 = arith.constant 0 : i32
    %c0_i32_0 = arith.constant 0 : i32
    return %c0_i32, %arg1 : i32, i32
  }
  func.func @transform_3(%arg0: i32, %arg1: i32, %arg2: i32) -> (i32, i32) {
    %c0_i32 = arith.constant 0 : i32
    return %arg0, %arg1 : i32, i32
  }
}

</mosaic_0001>

<llo_original>
// kernel: tpu_custom_call.1
$region0: #{tpu_custom_call.1}
  #allocation0 [shape = 'u32[]', space=smem, size = 0x4, offset = 0x4, fixed_abs, tag = 'smem constant byte address 0x4 - core index']
  #allocation1 [shape = 'u32[144,128]{1,0:T(1,128)}', space=vmem, size = 0x12000, scoped, tag = 'internal scratch']
  #allocation2 [shape = 'f32[8,64]{1,0:T(8,128)}', space=vmem, size = 0x1000, scoped, tag = 'scratch operand']
  %s0 = inlined_call_operand.vmem [shape: f32[8,32], index: 0, kind: input, shape index: {}]
  %s1 = inlined_call_operand.vmem [shape: f32[64,32], index: 1, kind: input, shape index: {}]
  %s2 = inlined_call_operand.vmem [shape: f32[1,64], index: 2, kind: input, shape index: {}]
  %s3 = inlined_call_operand.hbm [shape: f32[8,64], index: 3, kind: output, shape index: {}]
  %s4 = sld [smem:[#allocation0]]
  $region30: #{tpu_custom_call.1} parent=0
    _
  %s6 = ssub.s32 1, %s4
  %s7 = scalar_select 0, %s6, %s4
  $region1: #{tpu_custom_call.1} parent=0
    #allocation3 [shape = 'u8[4096]{0}', space=vmem, size = 0x1000, scoped, tag = 'output window, operand 0, single buffered']
    #allocation4 [shape = 's32[1]{0}', space=sflag, size = 0x4, scoped, tag = 'scoped memory for tpu_custom_call.1']
    %8 = vsyncpa [#allocation4], 0
    // Predicated region
    $region2: #{tpu_custom_call.1} parent=1 // pred_check
      _
    $region3: #{tpu_custom_call.1} parent=1 // pred_check_branch
      %10 = sbr.rel (0) target = $region5
    $region4: #{tpu_custom_call.1} parent=1 // pred_region
      _
    $region5: #{tpu_custom_call.1} parent=1 // pred_fallthru
      _
    // Predicated region
    $region6: #{tpu_custom_call.1} parent=1 // pred_check
      _
    $region7: #{tpu_custom_call.1} parent=1 // pred_check_branch
      %12 = sbr.rel (0) target = $region9
    $region8: #{tpu_custom_call.1} parent=1 // pred_region
      _
    $region9: #{tpu_custom_call.1} parent=1 // pred_fallthru
      _
    // Predicated region
    $region10: #{tpu_custom_call.1} parent=1 // pred_check
      _
    $region11: #{tpu_custom_call.1} parent=1 // pred_check_branch
      %14 = sbr.rel (0) target = $region13
    $region12: #{tpu_custom_call.1} parent=1 // pred_region
      _
    $region13: #{tpu_custom_call.1} parent=1 // pred_fallthru
      _
    %p15 = scmp.eq.s32.totalorder 0, 0
    // Predicated region
    $region14: #{tpu_custom_call.1} parent=1 // pred_check
      %p16 = pneg %p15
    $region15: #{tpu_custom_call.1} parent=1 // pred_check_branch
      %18 = sbr.rel (%p16) target = $region17
    $region16: #{tpu_custom_call.1} parent=1 // pred_region
      %vm19 = vcmask 523264
      %20 = vst.msk [vmem:[#allocation2] sm:$0xff] %vm19, 0.0
    $region17: #{tpu_custom_call.1} parent=1 // pred_fallthru
      _
    %v21 = vld [vmem:[%s0] sm:$0xff]
    %v22 = vtanh.pop %v21
    %v23 = vld [vmem:[#allocation2] sm:$0xff]
    %v24 = vld [vmem:[%s1] sm:$0xff]
    %v25 = vld [vmem:[%s1 + $0x8] sm:$0xff]
    %v26 = vld [vmem:[%s1 + $0x10] sm:$0xff]
    %v27 = vld [vmem:[%s1 + $0x18] sm:$0xff]
    %v28 = vld [vmem:[%s1 + $0x20] sm:$0xff]
    %v29 = vld [vmem:[%s1 + $0x28] sm:$0xff]
    %v30 = vld [vmem:[%s1 + $0x30] sm:$0xff]
    %v31 = vld [vmem:[%s1 + $0x38] sm:$0xff]
    %vm32 = vcmask 261120
    %v34 = vsel %vm32, %v22, 0
    %v37 = vsel %vm32, %v24, 0
    %v40 = vsel %vm32, %v25, 0
    %v43 = vsel %vm32, %v26, 0
    %v46 = vsel %vm32, %v27, 0
    %v49 = vsel %vm32, %v28, 0
    %v52 = vsel %vm32, %v29, 0
    %v55 = vsel %vm32, %v30, 0
    %v58 = vsel %vm32, %v31, 0
    %60 = vmatprep.subr.mxu0 0.0
    %61 = vmatpush1.xpose.msra.mxu0 %v37
    %62 = vmatprep.subr.mxu0 0.0
    %63 = vmatpush1.xpose.msra.mxu0 %v40
    %64 = vmatprep.subr.mxu0 0.0
    %65 = vmatpush1.xpose.msra.mxu0 %v43
    %66 = vmatprep.subr.mxu0 0.0
    %67 = vmatpush1.xpose.msra.mxu0 %v46
    %68 = vmatprep.subr.mxu0 0.0
    %69 = vmatpush1.xpose.msra.mxu0 %v49
    %70 = vmatprep.subr.mxu0 0.0
    %71 = vmatpush1.xpose.msra.mxu0 %v52
    %72 = vmatprep.subr.mxu0 0.0
    %73 = vmatpush1.xpose.msra.mxu0 %v55
    %74 = vmatprep.subr.mxu0 0.0
    %75 = vmatpush1.xpose.msra.mxu0 %v58
    %76 = vmatprep.subr.mxu0 0.0
    %77 = vmatpush1.xpose.msra.mxu0 0.0
    %78 = vmatprep.subr.mxu0 0.0
    %79 = vmatpush1.xpose.msra.mxu0 0.0
    %80 = vmatprep.subr.mxu0 0.0
    %81 = vmatpush1.xpose.msra.mxu0 0.0
    %82 = vmatprep.subr.mxu0 0.0
    %83 = vmatpush1.xpose.msra.mxu0 0.0
    %84 = vmatprep.subr.mxu0 0.0
    %85 = vmatpush1.xpose.msra.mxu0 0.0
    %86 = vmatprep.subr.mxu0 0.0
    %87 = vmatpush1.xpose.msra.mxu0 0.0
    %88 = vmatprep.subr.mxu0 0.0
    %89 = vmatpush1.xpose.msra.mxu0 0.0
    %90 = vmatprep.subr.mxu0 0.0
    %91 = vmatpush1.xpose.msra.mxu0 0.0
    %92 = vmatprep.subr.mxu0 0.0
    %93 = vmatpush1.xpose.msra.mxu0 0.0
    %94 = vmatprep.subr.mxu0 0.0
    %95 = vmatpush1.xpose.msra.mxu0 0.0
    %96 = vmatprep.subr.mxu0 0.0
    %97 = vmatpush1.xpose.msra.mxu0 0.0
    %98 = vmatprep.subr.mxu0 0.0
    %99 = vmatpush1.xpose.msra.mxu0 0.0
    %100 = vmatprep.subr.mxu0 0.0
    %101 = vmatpush1.xpose.msra.mxu0 0.0
    %102 = vmatprep.subr.mxu0 0.0
    %103 = vmatpush1.xpose.msra.mxu0 0.0
    %104 = vmatprep.subr.mxu0 0.0
    %105 = vmatpush1.xpose.msra.mxu0 0.0
    %106 = vmatprep.subr.mxu0 0.0
    %107 = vmatpush1.xpose.msra.mxu0 0.0
    %108 = vmatprep.subr.mxu0 0.0
    %109 = vmatpush1.xpose.msra.mxu0 0.0
    %110 = vmatprep.subr.mxu0 0.0
    %111 = vmatpush1.xpose.msra.mxu0 0.0
    %112 = vmatprep.subr.mxu0 0.0
    %113 = vmatpush1.xpose.msra.mxu0 0.0
    %114 = vmatprep.subr.mxu0 0.0
    %115 = vmatpush1.xpose.msra.mxu0 0.0
    %116 = vmatprep.subr.mxu0 0.0
    %117 = vmatpush1.xpose.msra.mxu0 0.0
    %118 = vmatprep.subr.mxu0 0.0
    %119 = vmatpush1.xpose.msra.mxu0 0.0
    %120 = vmatprep.subr.mxu0 0.0
    %121 = vmatpush1.xpose.msra.mxu0 0.0
    %122 = vmatprep.subr.mxu0 0.0
    %123 = vmatpush1.xpose.msra.mxu0 0.0
    %124 = vmatprep.mubr.f32.mxu0 0.0
    %125 = vmatmul.mubr.f32.gmra.mrb[0].mxu0 %v34
    %v126 = vpop.f32.mrb[0].mxu0
    %v127 = vadd.f32 0.0, %v126
    %v128 = vpop.f32.mrb[0].mxu0
    %129 = vdwg.mxu0
    %v130 = vadd.f32 %v23, %v127
    %vm131 = vcmask 523264
    %132 = vst.msk [vmem:[#allocation2] sm:$0xff] %vm131, %v130
    // Predicated region
    $region18: #{tpu_custom_call.1} parent=1 // pred_check
      %p133 = pneg %p15
    $region19: #{tpu_custom_call.1} parent=1 // pred_check_branch
      %135 = sbr.rel (%p133) target = $region21
    $region20: #{tpu_custom_call.1} parent=1 // pred_region
      %v136 = vld [vmem:[#allocation2] sm:$0xff]
      %v137 = vld [vmem:[%s2] sm:$0x1]
      %v139 = vlaneseq
      %v140 = vshrl.u32 %v139, 7
      %v141 = vsub.s32 0, %v140
      %v142 = vrot.slane %v137, %v141
      %v144 = vadd.f32 %v136, %v142
      %145 = vst.msk [vmem:[#allocation3] sm:$0xff] %vm131, %v144
    $region21: #{tpu_custom_call.1} parent=1 // pred_fallthru
      _
    // Predicated region
    $region22: #{tpu_custom_call.1} parent=1 // pred_check
      _
    $region23: #{tpu_custom_call.1} parent=1 // pred_check_branch
      %147 = sbr.rel (0) target = $region25
    $region24: #{tpu_custom_call.1} parent=1 // pred_region
      %s149 = ssub.s32 128, 128
      %150 = vsyncadd [#allocation4], %s149
      %s152 = sshll.u32 [#allocation3], 4
      %s153 = int_to_ptr.vmem [resolvable:$true] %s152
      %155 = dma.vmem_to_hbm [thread:$0]  %s153, 128, %s3, [#allocation4]
    $region25: #{tpu_custom_call.1} parent=1 // pred_fallthru
      _
    // Predicated region
    $region26: #{tpu_custom_call.1} parent=1 // pred_check
      _
    $region27: #{tpu_custom_call.1} parent=1 // pred_check_branch
      %157 = sbr.rel (0) target = $region29
    $region28: #{tpu_custom_call.1} parent=1 // pred_region
      %158 = dma.done [#allocation4], 128
    $region29: #{tpu_custom_call.1} parent=1 // pred_fallthru
      _
    %159 = vsyncpa [#allocation4], 1

</llo_original>
